<compile_context>
chip_gen: v7x
topology: tpu7x:2x2x1
jax: 0.10.0
libtpu: 0.0.40
codegen_flags: <defaults>
</compile_context>

<pallas_src>
import functools
import math

import jax
import jax.numpy as jnp
from jax.experimental import pallas as pl
from jax.experimental.pallas import tpu as pltpu

LANES = 128
SUBLANES = 8
ACC_ROWS_MAX = 64                       # resident accumulator height (8 f32 vregs)
TILE_BYTES = 2 * 1024 * 1024            # per-input block per grid step
VMEM_LIMIT_BYTES = 40 * 1024 * 1024     # explicit scoped-VMEM limit (safe on v5e/v6e/v7x)
MIN_PALLAS_ELEMS = SUBLANES * LANES     # below one (8,128) slab, plain jnp is cheaper


def _smooth_l1(sq, ad, huber_delta):
    # PyTorch SmoothL1Loss(beta=delta):
    #   |x| < delta : 0.5 * x^2 / delta      (strength-reduced: (0.5/delta) * x^2)
    #   else        : |x| - 0.5 * delta
    if huber_delta > 0.0:
        return jnp.where(ad < huber_delta, (0.5 / huber_delta) * sq,
                         ad - 0.5 * huber_delta)
    return ad  # beta=0 degenerates to pure L1


def _robust_loss_kernel(pred_ref, targ_ref, out_ref, *,
                        w_mse, w_hub, huber_delta,
                        tile_r, tiles_per_shard, valid_rows,
                        first_masked_tile, need_mask, acc_rows):
    k = pl.program_id(1)   # reduction axis ("arbitrary")

    @pl.when(k == 0)
    def _():
        out_ref[...] = jnp.zeros_like(out_ref)

    def contrib():
        d = pred_ref[...].astype(jnp.float32) - targ_ref[...].astype(jnp.float32)
        sq = d * d
        ad = jnp.abs(d)
        hub = _smooth_l1(sq, ad, huber_delta)
        # Fused, pre-scaled contribution: alpha/N * sq + beta/N * huber.
        # (Pre-scaling before accumulation is marginally less accurate than
        #  sum-then-scale but fine for a scalar loss with thousands of f32
        #  partial accumulator slots.)
        return w_mse * sq + w_hub * hub

    def accumulate(c):
        # Fold onto the resident (acc_rows, 128) accumulator: up to 8 vregs of
        # independent add chains keep the VALU slots busy instead of one long
        # serial fold; acc_rows divides tile_r and is sublane-aligned so the
        # reshape is layout-preserving.
        out_ref[...] += jnp.sum(
            c.reshape(tile_r // acc_rows, acc_rows, LANES), axis=0)[None]

    if not need_mask:
        accumulate(contrib())
    else:
        # Logical (unclamped) tile index of this grid step.
        t = pl.program_id(0) * tiles_per_shard + k

        @pl.when(t < first_masked_tile)
        def _():
            accumulate(contrib())

        @pl.when(t >= first_masked_tile)
        def _():
            # Row-granular mask: covers (a) the ragged final block reading past
            # `valid_rows` (those rows are undefined, NOT zero-filled) and
            # (b) clamped duplicate shard tiles (fully masked out).
            row0 = t * tile_r
            sub = jax.lax.broadcasted_iota(jnp.int32, (tile_r, LANES), 0)
            accumulate(jnp.where(sub < (valid_rows - row0), contrib(), 0.0))


def _robust_loss_jnp(predictions, targets, alpha, beta, huber_delta):
    n = predictions.size
    d = predictions.reshape(-1).astype(jnp.float32) - targets.reshape(-1).astype(jnp.float32)
    sq = d * d
    ad = jnp.abs(d)
    hub = _smooth_l1(sq, ad, huber_delta)
    return jnp.sum((float(alpha) / n) * sq + (float(beta) / n) * hub)


def _tensorcores_per_chip():
    # Only v7x-class chips expose two TensorCores that Pallas can engage via
    # CORE_PARALLEL; on single-TC v5e/v6e a shard axis only adds wasted DMA and
    # mask work, so keep it at 1 there.
    try:
        kind = (getattr(jax.devices()[0], "device_kind", "") or "").lower()
    except Exception:
        return 1
    return 2 if "v7" in kind else 1


def robust_loss(predictions, targets, alpha=0.7, beta=0.3, huber_delta=1.0,
                *, max_tile_rows=None):
    assert predictions.shape == targets.shape
    assert huber_delta >= 0.0, "huber_delta must be >= 0 (PyTorch SmoothL1Loss beta)"
    n_elems = int(predictions.size)
    assert n_elems > 0

    # Small-input fast path: a pallas_call launch costs ~us of fixed overhead;
    # below one (8,128) slab just compute in plain jnp.
    if n_elems < MIN_PALLAS_ELEMS:
        return _robust_loss_jnp(predictions, targets, alpha, beta, huber_delta)

    w_mse = float(alpha) / n_elems
    w_hub = float(beta) / n_elems

    # Lane-dense [rows, 128] view.  Pad (one extra HBM copy) ONLY when the
    # element count is not a multiple of 128 -- uncommon for NN tensors.
    # Zero padding contributes exactly 0 to both terms (d=0 -> sq=0, huber=0),
    # so it needs no extra in-kernel masking.
    p_flat = predictions.reshape(-1)
    t_flat = targets.reshape(-1)
    pad = (-n_elems) % LANES
    if pad:
        p_flat = jnp.pad(p_flat, (0, pad))
        t_flat = jnp.pad(t_flat, (0, pad))
    rows = (n_elems + pad) // LANES
    p2d = p_flat.reshape(rows, LANES)
    t2d = t_flat.reshape(rows, LANES)

    itemsize = jnp.dtype(predictions.dtype).itemsize
    # Block size in bytes: 2 MiB per input block (4096 f32 rows / 8192 bf16),
    # i.e. 8 MiB of double-buffered input -> well inside the explicit 40 MiB
    # VMEM limit on every generation while shrinking per-step overhead.
    # TODO(synk): on v7x a 4 MiB block would trim per-step tax further if the
    # toolchain's elementwise temporaries stay within VMEM; kept at 2 MiB for safety.
    tile_cap = (TILE_BYTES // (LANES * itemsize)) // ACC_ROWS_MAX * ACC_ROWS_MAX
    tile_cap = max(tile_cap, SUBLANES)
    if max_tile_rows is not None:           # testing hook (exercise multi-tile/mask paths)
        cap = max(SUBLANES, int(max_tile_rows) - int(max_tile_rows) % SUBLANES)
        tile_cap = min(tile_cap, cap)
    tile_r = rows if rows <= tile_cap else tile_cap
    tiles_total = -(-rows // tile_r)

    # Resident accumulator height: a sublane-aligned divisor of tile_r, up to
    # 64 rows.  Odd single-tile row counts fall back to the identity fold.
    acc_rows = math.gcd(tile_r, ACC_ROWS_MAX) if tile_r % SUBLANES == 0 else tile_r

    def run(num_shards):
        tiles_per_shard = -(-tiles_total // num_shards)
        ragged = (rows % tile_r) != 0
        first_masked = tiles_total - 1 if ragged else tiles_total
        need_mask = ragged or (num_shards * tiles_per_shard > tiles_total)

        def in_map(i, k):
            # Clamp so out-of-range shard tiles re-read the last valid block;
            # their contribution is fully masked inside the kernel.
            return (jnp.minimum(i * tiles_per_shard + k, tiles_total - 1), 0)

        kernel = functools.partial(
            _robust_loss_kernel,
            w_mse=w_mse, w_hub=w_hub, huber_delta=float(huber_delta),
            tile_r=tile_r, tiles_per_shard=tiles_per_shard, valid_rows=rows,
            first_masked_tile=first_masked, need_mask=need_mask,
            acc_rows=acc_rows)

        if num_shards > 1:
            dim_sem = (pltpu.CORE_PARALLEL, pltpu.ARBITRARY)
        else:
            dim_sem = ("arbitrary", "arbitrary")

        cost = pl.CostEstimate(
            flops=10 * n_elems, transcendentals=0,
            bytes_accessed=2 * n_elems * itemsize
                           + num_shards * acc_rows * LANES * 4)

        return pl.pallas_call(
            kernel,
            out_shape=jax.ShapeDtypeStruct((num_shards, acc_rows, LANES), jnp.float32),
            grid_spec=pltpu.PrefetchScalarGridSpec(
                num_scalar_prefetch=0,
                grid=(num_shards, tiles_per_shard),
                in_specs=[pl.BlockSpec((tile_r, LANES), in_map),
                          pl.BlockSpec((tile_r, LANES), in_map)],
                out_specs=pl.BlockSpec((1, acc_rows, LANES), lambda i, k: (i, 0, 0)),
            ),
            compiler_params=pltpu.CompilerParams(
                dimension_semantics=dim_sem,
                vmem_limit_bytes=VMEM_LIMIT_BYTES),
            cost_estimate=cost,
        )(p2d, t2d)

    num_shards = _tensorcores_per_chip() if tiles_total >= 2 else 1
    if num_shards > 1:
        try:
            partials = run(num_shards)
        except Exception:
            # TODO(synk): CORE_PARALLEL sharding rejected by this toolchain;
            # fall back to the single-TensorCore sweep.
            partials = run(1)
    else:
        partials = run(1)

    # Single tiny cross-lane reduce of the (num_shards, acc_rows, 128) partials.
    return jnp.sum(partials)


def robust_loss_ref(predictions, targets, alpha=0.7, beta=0.3, huber_delta=1.0):
    d = predictions.astype(jnp.float32) - targets.astype(jnp.float32)
    mse = jnp.mean(d * d)
    ad = jnp.abs(d)
    if huber_delta > 0.0:
        hub = jnp.where(ad < huber_delta, 0.5 * d * d / huber_delta, ad - 0.5 * huber_delta)
    else:
        hub = ad
    return alpha * mse + beta * jnp.mean(hub)


if __name__ == "__main__":
    key = jax.random.PRNGKey(0)
    k1, k2 = jax.random.split(key)

    # Primary check: small NCHW-like regression-output shape through the kernel.
    predictions = jax.random.normal(k1, (2, 4, 16, 16), dtype=jnp.float32)
    targets = jax.random.normal(k2, (2, 4, 16, 16), dtype=jnp.float32)
    loss = jax.block_until_ready(robust_loss(predictions, targets))
    ref = jax.block_until_ready(robust_loss_ref(predictions, targets))
    assert jnp.allclose(loss, ref, rtol=1e-5, atol=1e-6), (loss, ref)

    # Extra small-shape checks: masked ragged tail tile, pad-to-128 path,
    # tiny-input jnp fast path, and non-default loss hyperparameters.
    checks = [
        ((5, 4, 16, 16), dict(max_tile_rows=16)),                          # ragged tail tile
        ((5, 7, 33), dict()),                                              # pad-to-128 path
        ((3, 7, 11), dict()),                                              # jnp fast path
        ((2, 4, 16, 16), dict(alpha=0.5, beta=0.5, huber_delta=0.25)),     # other params
    ]
    for i, (shape, kw) in enumerate(checks):
        ka, kb = jax.random.split(jax.random.PRNGKey(i + 1))
        p = jax.random.normal(ka, shape, dtype=jnp.float32)
        t = jax.random.normal(kb, shape, dtype=jnp.float32)
        ref_kw = {k: v for k, v in kw.items() if k in ("alpha", "beta", "huber_delta")}
        got = jax.block_until_ready(robust_loss(p, t, **kw))
        want = jax.block_until_ready(robust_loss_ref(p, t, **ref_kw))
        assert jnp.allclose(got, want, rtol=1e-5, atol=1e-6), (shape, kw, got, want)

    print("KERNEL_OK")
</pallas_src>

<mosaic_0001>
module attributes {stable_mosaic.version = 11 : i64} {
  func.func @_robust_loss_kernel(%arg0: i32, %arg1: i32, %arg2: memref<16x128xf32, #tpu.memory_space<vmem>>, %arg3: memref<16x128xf32, #tpu.memory_space<vmem>>, %arg4: memref<1x16x128xf32, #tpu.memory_space<vmem>>) attributes {dimension_semantics = [#tpu.dimension_semantics<arbitrary>, #tpu.dimension_semantics<arbitrary>], iteration_bounds = array<i64: 1, 1>, scalar_prefetch = 0 : i64, scratch_operands = 0 : i64, tpu.core_type = #tpu.core_type<tc>, window_params = [{transform_indices = @transform_0, window_bounds = array<i64: 16, 128>}, {transform_indices = @transform_1, window_bounds = array<i64: 16, 128>}, {transform_indices = @transform_2, window_bounds = array<i64: 1, 16, 128>}]} {
    %c0_i32 = arith.constant 0 : i32
    %0 = arith.cmpi eq, %arg1, %c0_i32 : i32
    %1 = arith.extui %0 : i1 to i32
    %c0_i32_0 = arith.constant 0 : i32
    %2 = arith.cmpi ne, %1, %c0_i32_0 : i32
    scf.if %2 {
      %cst_15 = arith.constant 0.000000e+00 : f32
      %26 = vector.broadcast %cst_15 : f32 to vector<1x16x128xf32>
      %c0_16 = arith.constant 0 : index
      %c0_17 = arith.constant 0 : index
      %c0_18 = arith.constant 0 : index
      %27 = vector.load %arg4[%c0_16, %c0_17, %c0_18] : memref<1x16x128xf32, #tpu.memory_space<vmem>>, vector<1x16x128xf32>
      tpu.vector_store %arg4[%c0_16, %c0_17, %c0_18], %26 {strides = array<i32>} : memref<1x16x128xf32, #tpu.memory_space<vmem>>, vector<1x16x128xf32>,
    } else {
    }
    %c0 = arith.constant 0 : index
    %c0_1 = arith.constant 0 : index
    %3 = vector.load %arg2[%c0, %c0_1] : memref<16x128xf32, #tpu.memory_space<vmem>>, vector<16x128xf32>
    %c0_2 = arith.constant 0 : index
    %c0_3 = arith.constant 0 : index
    %4 = vector.load %arg3[%c0_2, %c0_3] : memref<16x128xf32, #tpu.memory_space<vmem>>, vector<16x128xf32>
    %5 = arith.subf %3, %4 : vector<16x128xf32>
    %6 = arith.mulf %5, %5 : vector<16x128xf32>
    %7 = math.absf %5 : vector<16x128xf32>
    %cst = arith.constant 1.000000e+00 : f32
    %8 = vector.broadcast %cst : f32 to vector<16x128xf32>
    %9 = arith.cmpf olt, %7, %8 : vector<16x128xf32>
    %cst_4 = arith.constant 5.000000e-01 : f32
    %10 = vector.broadcast %cst_4 : f32 to vector<16x128xf32>
    %11 = arith.mulf %10, %6 : vector<16x128xf32>
    %cst_5 = arith.constant 5.000000e-01 : f32
    %12 = vector.broadcast %cst_5 : f32 to vector<16x128xf32>
    %13 = arith.subf %7, %12 : vector<16x128xf32>
    %14 = arith.select %9, %11, %13 : vector<16x128xi1>, vector<16x128xf32>
    %cst_6 = arith.constant 3.41796869E-4 : f32
    %15 = vector.broadcast %cst_6 : f32 to vector<16x128xf32>
    %16 = arith.mulf %15, %6 : vector<16x128xf32>
    %cst_7 = arith.constant 1.46484381E-4 : f32
    %17 = vector.broadcast %cst_7 : f32 to vector<16x128xf32>
    %18 = arith.mulf %17, %14 : vector<16x128xf32>
    %19 = arith.addf %16, %18 : vector<16x128xf32>
    %c0_8 = arith.constant 0 : index
    %c0_9 = arith.constant 0 : index
    %c0_10 = arith.constant 0 : index
    %20 = vector.load %arg4[%c0_8, %c0_9, %c0_10] : memref<1x16x128xf32, #tpu.memory_space<vmem>>, vector<1x16x128xf32>
    %21 = vector.shape_cast %19 : vector<16x128xf32> to vector<1x16x128xf32>
    %cst_11 = arith.constant dense<0.000000e+00> : vector<16x128xf32>
    %22 = vector.multi_reduction <add>, %21, %cst_11 [0] : vector<1x16x128xf32> to vector<16x128xf32>
    %23 = vector.shape_cast %22 : vector<16x128xf32> to vector<1x16x128xf32>
    %24 = arith.addf %20, %23 : vector<1x16x128xf32>
    %c0_12 = arith.constant 0 : index
    %c0_13 = arith.constant 0 : index
    %c0_14 = arith.constant 0 : index
    %25 = vector.load %arg4[%c0_12, %c0_13, %c0_14] : memref<1x16x128xf32, #tpu.memory_space<vmem>>, vector<1x16x128xf32>
    tpu.vector_store %arg4[%c0_12, %c0_13, %c0_14], %24 {strides = array<i32>} : memref<1x16x128xf32, #tpu.memory_space<vmem>>, vector<1x16x128xf32>,
    return
  }
  func.func @transform_0(%arg0: i32, %arg1: i32) -> (i32, i32) {
    %c1_i32 = arith.constant 1 : i32
    %0 = arith.muli %arg0, %c1_i32 : i32
    %1 = arith.addi %0, %arg1 : i32
    %c0_i32 = arith.constant 0 : i32
    %2 = arith.minsi %1, %c0_i32 : i32
    %c0_i32_0 = arith.constant 0 : i32
    %c0_i32_1 = arith.constant 0 : i32
    return %2, %c0_i32_0 : i32, i32
  }
  func.func @transform_1(%arg0: i32, %arg1: i32) -> (i32, i32) {
    %c1_i32 = arith.constant 1 : i32
    %0 = arith.muli %arg0, %c1_i32 : i32
    %1 = arith.addi %0, %arg1 : i32
    %c0_i32 = arith.constant 0 : i32
    %2 = arith.minsi %1, %c0_i32 : i32
    %c0_i32_0 = arith.constant 0 : i32
    %c0_i32_1 = arith.constant 0 : i32
    return %2, %c0_i32_0 : i32, i32
  }
  func.func @transform_2(%arg0: i32, %arg1: i32) -> (i32, i32, i32) {
    %c0_i32 = arith.constant 0 : i32
    %c0_i32_0 = arith.constant 0 : i32
    %c0_i32_1 = arith.constant 0 : i32
    return %arg0, %c0_i32, %c0_i32_0 : i32, i32, i32
  }
}

</mosaic_0001>

<llo_original>
// kernel: tpu_custom_call.1
$region0: #{tpu_custom_call.1}
  #allocation0 [shape = 'u32[]', space=smem, size = 0x4, offset = 0x4, fixed_abs, tag = 'smem constant byte address 0x4 - core index']
  #allocation1 [shape = 'u32[144,128]{1,0:T(1,128)}', space=vmem, size = 0x12000, scoped, tag = 'internal scratch']
  %s0 = inlined_call_operand.hbm [shape: f32[16,128], index: 0, kind: input, shape index: {}]
  %s1 = inlined_call_operand.hbm [shape: f32[16,128], index: 1, kind: input, shape index: {}]
  %s2 = inlined_call_operand.hbm [shape: f32[1,16,128], index: 2, kind: output, shape index: {}]
  %s3 = sld [smem:[#allocation0]]
  $region30: #{tpu_custom_call.1} parent=0
    _
  %s5 = ssub.s32 1, %s3
  %s6 = scalar_select 0, %s5, %s3
  $region1: #{tpu_custom_call.1} parent=0
    #allocation2 [shape = 'u8[8192]{0}', space=vmem, size = 0x2000, scoped, tag = 'input window, operand 0, single buffered']
    #allocation3 [shape = 's32[1]{0}', space=sflag, size = 0x4, scoped, tag = 'scoped memory for tpu_custom_call.1']
    #allocation4 [shape = 's32[1]{0}', space=sflag, size = 0x4, scoped, tag = 'scoped memory for tpu_custom_call.1']
    #allocation5 [shape = 'u8[8192]{0}', space=vmem, size = 0x2000, scoped, tag = 'input window, operand 1, single buffered']
    #allocation6 [shape = 's32[1]{0}', space=sflag, size = 0x4, scoped, tag = 'scoped memory for tpu_custom_call.1']
    #allocation7 [shape = 'u8[8192]{0}', space=vmem, size = 0x2000, scoped, tag = 'output window, operand 0, single buffered']
    %7 = vsyncpa [#allocation3], 0
    %8 = vsyncpa [#allocation6], 0
    %9 = vsyncpa [#allocation4], 0
    // Predicated region
    $region2: #{tpu_custom_call.1} parent=1 // pred_check
      _
    $region3: #{tpu_custom_call.1} parent=1 // pred_check_branch
      %11 = sbr.rel (0) target = $region5
    $region4: #{tpu_custom_call.1} parent=1 // pred_region
      %s12 = sadd.s32 0, 0
      %p13 = scmp.lt.s32.totalorder %s12, 0
      %s14 = scalar_select %p13, %s12, 0
      %s15 = smul.u32 2, %s14
      %s17 = ssub.s32 256, 256
      %18 = vsyncadd [#allocation3], %s17
      %s19 = smul.addr %s15, 128
      %s20 = scalar_lea.hbm %s0, %s19
      %s21 = sshll.u32 [#allocation2], 4
      %s22 = int_to_ptr.vmem [resolvable:$true] %s21
      %27 = dma.hbm_to_vmem [thread:$0]  %s20, 256, %s22, [#allocation3], 128, 128, 8
    $region5: #{tpu_custom_call.1} parent=1 // pred_fallthru
      _
    // Predicated region
    $region6: #{tpu_custom_call.1} parent=1 // pred_check
      _
    $region7: #{tpu_custom_call.1} parent=1 // pred_check_branch
      %29 = sbr.rel (0) target = $region9
    $region8: #{tpu_custom_call.1} parent=1 // pred_region
      %s30 = sadd.s32 0, 0
      %p31 = scmp.lt.s32.totalorder %s30, 0
      %s32 = scalar_select %p31, %s30, 0
      %s33 = smul.u32 2, %s32
      %s35 = ssub.s32 256, 256
      %36 = vsyncadd [#allocation6], %s35
      %s37 = smul.addr %s33, 128
      %s38 = scalar_lea.hbm %s1, %s37
      %s39 = sshll.u32 [#allocation5], 4
      %s40 = int_to_ptr.vmem [resolvable:$true] %s39
      %45 = dma.hbm_to_vmem [thread:$0]  %s38, 256, %s40, [#allocation6], 128, 128, 8
    $region9: #{tpu_custom_call.1} parent=1 // pred_fallthru
      _
    // Predicated region
    $region10: #{tpu_custom_call.1} parent=1 // pred_check
      _
    $region11: #{tpu_custom_call.1} parent=1 // pred_check_branch
      %47 = sbr.rel (0) target = $region13
    $region12: #{tpu_custom_call.1} parent=1 // pred_region
      %48 = dma.done [#allocation3], 256
    $region13: #{tpu_custom_call.1} parent=1 // pred_fallthru
      _
    // Predicated region
    $region14: #{tpu_custom_call.1} parent=1 // pred_check
      _
    $region15: #{tpu_custom_call.1} parent=1 // pred_check_branch
      %50 = sbr.rel (0) target = $region17
    $region16: #{tpu_custom_call.1} parent=1 // pred_region
      %51 = dma.done [#allocation6], 256
    $region17: #{tpu_custom_call.1} parent=1 // pred_fallthru
      _
    %s52 = sadd.s32 0, 0
    %p53 = scmp.lt.s32.totalorder %s52, 0
    %s54 = scalar_select %p53, %s52, 0
    %s55 = smul.u32 2, %s54
    %s56 = sadd.s32 0, 0
    %p57 = scmp.lt.s32.totalorder %s56, 0
    %s58 = scalar_select %p57, %s56, 0
    %s59 = smul.u32 2, %s58
    %p60 = scmp.eq.s32.totalorder 0, 0
    // Predicated region
    $region18: #{tpu_custom_call.1} parent=1 // pred_check
      %p61 = pneg %p60
    $region19: #{tpu_custom_call.1} parent=1 // pred_check_branch
      %63 = sbr.rel (%p61) target = $region21
    $region20: #{tpu_custom_call.1} parent=1 // pred_region
      %64 = vst [vmem:[#allocation7] sm:$0xff] 0.0
      %65 = vst [vmem:[#allocation7 + $0x8] sm:$0xff] 0.0
    $region21: #{tpu_custom_call.1} parent=1 // pred_fallthru
      _
    %v66 = vld [vmem:[#allocation2] sm:$0xff]
    %v67 = vld [vmem:[#allocation2 + $0x8] sm:$0xff]
    %v68 = vld [vmem:[#allocation5] sm:$0xff]
    %v69 = vld [vmem:[#allocation5 + $0x8] sm:$0xff]
    %v70 = vsub.f32 %v66, %v68
    %v71 = vsub.f32 %v67, %v69
    %v72 = vmul.f32 %v70, %v70
    %v73 = vmul.f32 %v71, %v71
    %v74 = vand.u32 2147483647, %v70
    %v75 = vand.u32 2147483647, %v71
    %vm76 = vcmp.lt.f32.partialorder %v74, 1.0
    %vm77 = vcmp.lt.f32.partialorder %v75, 1.0
    %v78 = vmul.f32 %v72, 0.5
    %v79 = vmul.f32 %v73, 0.5
    %v80 = vsub.f32 %v74, 0.5
    %v81 = vsub.f32 %v75, 0.5
    %v82 = vsel %vm76, %v78, %v80
    %v83 = vsel %vm77, %v79, %v81
    %v84 = vmul.f32 %v72, 0.00034179687
    %v85 = vmul.f32 %v73, 0.00034179687
    %v86 = vmul.f32 %v82, 0.00014648438
    %v87 = vmul.f32 %v83, 0.00014648438
    %v88 = vadd.f32 %v84, %v86
    %v89 = vadd.f32 %v85, %v87
    %v90 = vld [vmem:[#allocation7] sm:$0xff]
    %v91 = vld [vmem:[#allocation7 + $0x8] sm:$0xff]
    %v92 = vadd.f32 %v88, 0.0
    %v93 = vadd.f32 %v89, 0.0
    %v94 = vadd.f32 %v90, %v92
    %v95 = vadd.f32 %v91, %v93
    %96 = vst [vmem:[#allocation7] sm:$0xff] %v94
    %97 = vst [vmem:[#allocation7 + $0x8] sm:$0xff] %v95
    // Predicated region
    $region22: #{tpu_custom_call.1} parent=1 // pred_check
      _
    $region23: #{tpu_custom_call.1} parent=1 // pred_check_branch
      %99 = sbr.rel (0) target = $region25
    $region24: #{tpu_custom_call.1} parent=1 // pred_region
      %s101 = ssub.s32 256, 256
      %102 = vsyncadd [#allocation4], %s101
      %s103 = sshll.u32 [#allocation7], 4
      %s104 = int_to_ptr.vmem [resolvable:$true] %s103
      %109 = dma.vmem_to_hbm [thread:$0]  %s104, 256, %s2, [#allocation4], 128, 128, 8
    $region25: #{tpu_custom_call.1} parent=1 // pred_fallthru
      _
    // Predicated region
    $region26: #{tpu_custom_call.1} parent=1 // pred_check
      _
    $region27: #{tpu_custom_call.1} parent=1 // pred_check_branch
      %111 = sbr.rel (0) target = $region29
    $region28: #{tpu_custom_call.1} parent=1 // pred_region
      %112 = dma.done [#allocation4], 256
    $region29: #{tpu_custom_call.1} parent=1 // pred_fallthru
      _
    %113 = vsyncpa [#allocation3], 1
    %114 = vsyncpa [#allocation6], 1
    %115 = vsyncpa [#allocation4], 1

</llo_original>
